<compile_context>
chip_gen: v7x
topology: tpu7x:2x2x1
jax: 0.10.0
libtpu: 0.0.40
codegen_flags: <defaults>
</compile_context>

<pallas_src>
import jax
import jax.numpy as jnp
from jax.experimental import pallas as pl
from jax.experimental.pallas import tpu as pltpu


def _recog_rnn_seq_kernel(x_ref, h0_ref, w1x_ref, w1h_ref, b1_ref,
                          w2_ref, b2_ref, out_ref, h_ref):
    """One grid step = one RNN timestep. h_ref is the resident hidden carry."""
    t = pl.program_id(0)

    @pl.when(t == 0)
    def _():
        # init hidden from the (resident, DMA'd-once) h0 input.
        h_ref[...] = h0_ref[...]

    x = x_ref[0]                       # (B, D)  bf16 streamed timestep input
    h = h_ref[...]                     # (B, H)  f32 carried hidden state

    # cat([x, h], dim=1) @ W1^T + b1, in split-weight form (bf16 operands,
    # f32 MXU accumulation; bias add + tanh stay f32 for v5e EUP).
    pre = (jnp.dot(x, w1x_ref[...], preferred_element_type=jnp.float32)
           + jnp.dot(h.astype(w1h_ref.dtype), w1h_ref[...],
                     preferred_element_type=jnp.float32)
           + b1_ref[...])
    h_new = jnp.tanh(pre)              # (B, H) f32

    out = (jnp.dot(h_new.astype(w2_ref.dtype), w2_ref[...],
                   preferred_element_type=jnp.float32)
           + b2_ref[...])              # (B, O) f32

    h_ref[...] = h_new                 # carry to next timestep (resident block)
    out_ref[0] = out.astype(out_ref.dtype)


def prepare_params(params, compute_dtype=jnp.bfloat16):
    """One-time prep: PyTorch (out,in) Linear weights -> kernel layout.

    Hoisted out of the per-step call path (transposes / slices / casts run once).
    """
    i2h_w = jnp.asarray(params["i2h_w"])   # (H, 2D)
    i2h_b = jnp.asarray(params["i2h_b"])   # (H,)
    h2o_w = jnp.asarray(params["h2o_w"])   # (O, H)
    h2o_b = jnp.asarray(params["h2o_b"])   # (O,)
    H, in2 = i2h_w.shape
    D = in2 // 2
    O = h2o_w.shape[0]
    w1_t = i2h_w.T.astype(compute_dtype)   # (2D, H)
    return {
        "w1x": w1_t[:D, :],                            # (D, H)  x-half of concat
        "w1h": w1_t[D:, :],                            # (D, H)  h-half of concat
        "b1": i2h_b.reshape(1, H).astype(jnp.float32),
        "w2": h2o_w.T.astype(compute_dtype),           # (H, O)
        "b2": h2o_b.reshape(1, O).astype(jnp.float32),
    }


def recognition_rnn_sequence(xs, h0, prep):
    """Run the RNN cell over a full sequence in a single fused pallas_call.

    xs : (T, B, D), h0 : (B, H).
    Returns (outs, h_last): outs (T, B, O) f32, h_last (B, H) f32.
    """
    T, B, D = xs.shape
    H, O = prep["w2"].shape
    cdt = prep["w1x"].dtype

    xs_c = xs.astype(cdt)              # single cast for the whole sequence
    h0_c = h0.astype(jnp.float32)

    const2d = lambda t: (0, 0)         # weights / biases / h0 / hidden: resident

    outs, h_last = pl.pallas_call(
        _recog_rnn_seq_kernel,
        out_shape=(
            jax.ShapeDtypeStruct((T, B, O), jnp.float32),
            jax.ShapeDtypeStruct((B, H), jnp.float32),
        ),
        grid=(T,),
        in_specs=[
            pl.BlockSpec((1, B, D), lambda t: (t, 0, 0)),   # x_t streamed per step
            pl.BlockSpec((B, H), const2d),                  # h0 (read at t==0)
            pl.BlockSpec((D, H), const2d),                  # w1x resident
            pl.BlockSpec((D, H), const2d),                  # w1h resident
            pl.BlockSpec((1, H), const2d),                  # b1 resident
            pl.BlockSpec((H, O), const2d),                  # w2 resident
            pl.BlockSpec((1, O), const2d),                  # b2 resident
        ],
        out_specs=(
            pl.BlockSpec((1, B, O), lambda t: (t, 0, 0)),   # per-step output
            pl.BlockSpec((B, H), const2d),                  # resident hidden carry
        ),
        compiler_params=pltpu.CompilerParams(
            dimension_semantics=("arbitrary",)),            # recurrence over T
    )(xs_c, h0_c, prep["w1x"], prep["w1h"], prep["b1"], prep["w2"], prep["b2"])
    return outs, h_last


def recognition_rnn_forward(x, h, prep, *, n_spiral, latent_dim):
    """Exact equivalent of RecognitionRNN.forward(x, h) — one step."""
    outs, h_new = recognition_rnn_sequence(x[None], h, prep)
    out = outs[0].reshape(-1, n_spiral, latent_dim * 2)
    return out, h_new


def _reference_sequence(xs, h0, params):
    def step(h, x):
        combined = jnp.concatenate([x, h], axis=1)
        h_new = jnp.tanh(combined @ params["i2h_w"].T + params["i2h_b"])
        out = h_new @ params["h2o_w"].T + params["h2o_b"]
        return h_new, (out, h_new)
    h_last, (outs, hs) = jax.lax.scan(step, h0, xs)
    return outs, hs, h_last


if __name__ == "__main__":
    # Module hyperparameters (n_hidden is unused by forward, as in the module).
    latent_dim = 4
    n_spiral = 4
    n_channel = 2
    batch = 8
    T = 6

    D = n_spiral * n_channel             # x / h feature dim
    H = D                                # i2h output dim
    O = n_spiral * latent_dim * 2        # h2o output dim

    key = jax.random.PRNGKey(0)
    k = jax.random.split(key, 6)
    params = {
        "i2h_w": jax.random.normal(k[0], (H, 2 * D), jnp.float32) * 0.1,
        "i2h_b": jax.random.normal(k[1], (H,), jnp.float32) * 0.1,
        "h2o_w": jax.random.normal(k[2], (O, H), jnp.float32) * 0.1,
        "h2o_b": jax.random.normal(k[3], (O,), jnp.float32) * 0.1,
    }
    prep = prepare_params(params)         # hoisted weight prep: runs exactly once

    xs = jax.random.normal(k[4], (T, batch, D), jnp.float32)
    h0 = jnp.zeros((batch, H), jnp.float32)   # init_hidden: zeros_like(input)

    # --- fused full-sequence kernel -----------------------------------------
    outs, h_last = recognition_rnn_sequence(xs, h0, prep)
    jax.block_until_ready((outs, h_last))

    ref_outs, ref_hs, ref_h_last = _reference_sequence(xs, h0, params)

    assert outs.shape == (T, batch, O), outs.shape
    assert h_last.shape == (batch, H), h_last.shape
    assert jnp.allclose(outs, ref_outs, atol=2e-2, rtol=2e-2), \
        float(jnp.max(jnp.abs(outs - ref_outs)))
    assert jnp.allclose(h_last, ref_h_last, atol=2e-2, rtol=2e-2), \
        float(jnp.max(jnp.abs(h_last - ref_h_last)))

    # --- single-step API matching the PyTorch module forward ----------------
    out1, h1 = recognition_rnn_forward(
        xs[0], h0, prep, n_spiral=n_spiral, latent_dim=latent_dim)
    jax.block_until_ready((out1, h1))

    ref_out1 = ref_outs[0].reshape(-1, n_spiral, latent_dim * 2)
    assert out1.shape == (batch, n_spiral, latent_dim * 2), out1.shape
    assert h1.shape == (batch, H), h1.shape
    assert jnp.allclose(out1, ref_out1, atol=2e-2, rtol=2e-2)
    assert jnp.allclose(h1, ref_hs[0], atol=2e-2, rtol=2e-2)

    print("KERNEL_OK")
</pallas_src>

<mosaic_0001>
module attributes {stable_mosaic.version = 11 : i64} {
  func.func @_recog_rnn_seq_kernel(%arg0: i32, %arg1: memref<1x8x8xbf16, #tpu.memory_space<vmem>>, %arg2: memref<8x8xf32, #tpu.memory_space<vmem>>, %arg3: memref<8x8xbf16, #tpu.memory_space<vmem>>, %arg4: memref<8x8xbf16, #tpu.memory_space<vmem>>, %arg5: memref<1x8xf32, #tpu.memory_space<vmem>>, %arg6: memref<8x32xbf16, #tpu.memory_space<vmem>>, %arg7: memref<1x32xf32, #tpu.memory_space<vmem>>, %arg8: memref<1x8x32xf32, #tpu.memory_space<vmem>>, %arg9: memref<8x8xf32, #tpu.memory_space<vmem>>) attributes {dimension_semantics = [#tpu.dimension_semantics<arbitrary>], iteration_bounds = array<i64: 6>, scalar_prefetch = 0 : i64, scratch_operands = 0 : i64, tpu.core_type = #tpu.core_type<tc>, window_params = [{transform_indices = @transform_0, window_bounds = array<i64: 1, 8, 8>}, {pipeline_mode = #tpu.pipeline_mode<synchronous>, transform_indices = @transform_1, window_bounds = array<i64: 8, 8>}, {pipeline_mode = #tpu.pipeline_mode<synchronous>, transform_indices = @transform_2, window_bounds = array<i64: 8, 8>}, {pipeline_mode = #tpu.pipeline_mode<synchronous>, transform_indices = @transform_3, window_bounds = array<i64: 8, 8>}, {pipeline_mode = #tpu.pipeline_mode<synchronous>, transform_indices = @transform_4, window_bounds = array<i64: 1, 8>}, {pipeline_mode = #tpu.pipeline_mode<synchronous>, transform_indices = @transform_5, window_bounds = array<i64: 8, 32>}, {pipeline_mode = #tpu.pipeline_mode<synchronous>, transform_indices = @transform_6, window_bounds = array<i64: 1, 32>}, {transform_indices = @transform_7, window_bounds = array<i64: 1, 8, 32>}, {pipeline_mode = #tpu.pipeline_mode<synchronous>, transform_indices = @transform_8, window_bounds = array<i64: 8, 8>}]} {
    %c0_i32 = arith.constant 0 : i32
    %0 = arith.cmpi eq, %arg0, %c0_i32 : i32
    %1 = arith.extui %0 : i1 to i32
    %c0_i32_0 = arith.constant 0 : i32
    %2 = arith.cmpi ne, %1, %c0_i32_0 : i32
    scf.if %2 {
      %c0_22 = arith.constant 0 : index
      %c0_23 = arith.constant 0 : index
      %26 = vector.load %arg2[%c0_22, %c0_23] : memref<8x8xf32, #tpu.memory_space<vmem>>, vector<8x8xf32>
      %c0_24 = arith.constant 0 : index
      %c0_25 = arith.constant 0 : index
      %27 = vector.load %arg9[%c0_24, %c0_25] : memref<8x8xf32, #tpu.memory_space<vmem>>, vector<8x8xf32>
      tpu.vector_store %arg9[%c0_24, %c0_25], %26 {strides = array<i32>} : memref<8x8xf32, #tpu.memory_space<vmem>>, vector<8x8xf32>,
    } else {
    }
    %c0 = arith.constant 0 : index
    %c0_1 = arith.constant 0 : index
    %c0_2 = arith.constant 0 : index
    %3 = vector.load %arg1[%c0, %c0_1, %c0_2] : memref<1x8x8xbf16, #tpu.memory_space<vmem>>, vector<1x8x8xbf16>
    %4 = vector.shape_cast %3 : vector<1x8x8xbf16> to vector<8x8xbf16>
    %c0_3 = arith.constant 0 : index
    %c0_4 = arith.constant 0 : index
    %5 = vector.load %arg9[%c0_3, %c0_4] : memref<8x8xf32, #tpu.memory_space<vmem>>, vector<8x8xf32>
    %c0_5 = arith.constant 0 : index
    %c0_6 = arith.constant 0 : index
    %6 = vector.load %arg3[%c0_5, %c0_6] : memref<8x8xbf16, #tpu.memory_space<vmem>>, vector<8x8xbf16>
    %cst = arith.constant dense<0.000000e+00> : vector<8x8xf32>
    %7 = tpu.matmul %4, %6, %cst {dimension_numbers = #tpu.dot_dimension_numbers<[1], [0], [0], [1], [0, 0, 1, 1], [], []>} : vector<8x8xbf16>, vector<8x8xbf16>, vector<8x8xf32> -> vector<8x8xf32>
    %8 = arith.truncf %5 : vector<8x8xf32> to vector<8x8xbf16>
    %c0_7 = arith.constant 0 : index
    %c0_8 = arith.constant 0 : index
    %9 = vector.load %arg4[%c0_7, %c0_8] : memref<8x8xbf16, #tpu.memory_space<vmem>>, vector<8x8xbf16>
    %cst_9 = arith.constant dense<0.000000e+00> : vector<8x8xf32>
    %10 = tpu.matmul %8, %9, %cst_9 {dimension_numbers = #tpu.dot_dimension_numbers<[1], [0], [0], [1], [0, 0, 1, 1], [], []>} : vector<8x8xbf16>, vector<8x8xbf16>, vector<8x8xf32> -> vector<8x8xf32>
    %11 = arith.addf %7, %10 : vector<8x8xf32>
    %c0_10 = arith.constant 0 : index
    %c0_11 = arith.constant 0 : index
    %12 = vector.load %arg5[%c0_10, %c0_11] : memref<1x8xf32, #tpu.memory_space<vmem>>, vector<1x8xf32>
    %13 = vector.broadcast %12 : vector<1x8xf32> to vector<8x8xf32>
    %14 = arith.addf %11, %13 : vector<8x8xf32>
    %15 = math.tanh %14 : vector<8x8xf32>
    %16 = arith.truncf %15 : vector<8x8xf32> to vector<8x8xbf16>
    %c0_12 = arith.constant 0 : index
    %c0_13 = arith.constant 0 : index
    %17 = vector.load %arg6[%c0_12, %c0_13] : memref<8x32xbf16, #tpu.memory_space<vmem>>, vector<8x32xbf16>
    %cst_14 = arith.constant dense<0.000000e+00> : vector<8x32xf32>
    %18 = tpu.matmul %16, %17, %cst_14 {dimension_numbers = #tpu.dot_dimension_numbers<[1], [0], [0], [1], [0, 0, 1, 1], [], []>} : vector<8x8xbf16>, vector<8x32xbf16>, vector<8x32xf32> -> vector<8x32xf32>
    %c0_15 = arith.constant 0 : index
    %c0_16 = arith.constant 0 : index
    %19 = vector.load %arg7[%c0_15, %c0_16] : memref<1x32xf32, #tpu.memory_space<vmem>>, vector<1x32xf32>
    %20 = vector.broadcast %19 : vector<1x32xf32> to vector<8x32xf32>
    %21 = arith.addf %18, %20 : vector<8x32xf32>
    %c0_17 = arith.constant 0 : index
    %c0_18 = arith.constant 0 : index
    %22 = vector.load %arg9[%c0_17, %c0_18] : memref<8x8xf32, #tpu.memory_space<vmem>>, vector<8x8xf32>
    tpu.vector_store %arg9[%c0_17, %c0_18], %15 {strides = array<i32>} : memref<8x8xf32, #tpu.memory_space<vmem>>, vector<8x8xf32>,
    %c0_19 = arith.constant 0 : index
    %c0_20 = arith.constant 0 : index
    %c0_21 = arith.constant 0 : index
    %23 = vector.load %arg8[%c0_19, %c0_20, %c0_21] : memref<1x8x32xf32, #tpu.memory_space<vmem>>, vector<1x8x32xf32>
    %24 = vector.shape_cast %23 : vector<1x8x32xf32> to vector<8x32xf32>
    %25 = vector.shape_cast %21 : vector<8x32xf32> to vector<1x8x32xf32>
    tpu.vector_store %arg8[%c0_19, %c0_20, %c0_21], %25 {strides = array<i32>} : memref<1x8x32xf32, #tpu.memory_space<vmem>>, vector<1x8x32xf32>,
    return
  }
  func.func @transform_0(%arg0: i32) -> (i32, i32, i32) {
    %c0_i32 = arith.constant 0 : i32
    %c0_i32_0 = arith.constant 0 : i32
    %c0_i32_1 = arith.constant 0 : i32
    return %arg0, %c0_i32, %c0_i32_0 : i32, i32, i32
  }
  func.func @transform_1(%arg0: i32) -> (i32, i32) {
    %c0_i32 = arith.constant 0 : i32
    %c0_i32_0 = arith.constant 0 : i32
    %c0_i32_1 = arith.constant 0 : i32
    return %c0_i32, %c0_i32_0 : i32, i32
  }
  func.func @transform_2(%arg0: i32) -> (i32, i32) {
    %c0_i32 = arith.constant 0 : i32
    %c0_i32_0 = arith.constant 0 : i32
    %c0_i32_1 = arith.constant 0 : i32
    return %c0_i32, %c0_i32_0 : i32, i32
  }
  func.func @transform_3(%arg0: i32) -> (i32, i32) {
    %c0_i32 = arith.constant 0 : i32
    %c0_i32_0 = arith.constant 0 : i32
    %c0_i32_1 = arith.constant 0 : i32
    return %c0_i32, %c0_i32_0 : i32, i32
  }
  func.func @transform_4(%arg0: i32) -> (i32, i32) {
    %c0_i32 = arith.constant 0 : i32
    %c0_i32_0 = arith.constant 0 : i32
    %c0_i32_1 = arith.constant 0 : i32
    return %c0_i32, %c0_i32_0 : i32, i32
  }
  func.func @transform_5(%arg0: i32) -> (i32, i32) {
    %c0_i32 = arith.constant 0 : i32
    %c0_i32_0 = arith.constant 0 : i32
    %c0_i32_1 = arith.constant 0 : i32
    return %c0_i32, %c0_i32_0 : i32, i32
  }
  func.func @transform_6(%arg0: i32) -> (i32, i32) {
    %c0_i32 = arith.constant 0 : i32
    %c0_i32_0 = arith.constant 0 : i32
    %c0_i32_1 = arith.constant 0 : i32
    return %c0_i32, %c0_i32_0 : i32, i32
  }
  func.func @transform_7(%arg0: i32) -> (i32, i32, i32) {
    %c0_i32 = arith.constant 0 : i32
    %c0_i32_0 = arith.constant 0 : i32
    %c0_i32_1 = arith.constant 0 : i32
    return %arg0, %c0_i32, %c0_i32_0 : i32, i32, i32
  }
  func.func @transform_8(%arg0: i32) -> (i32, i32) {
    %c0_i32 = arith.constant 0 : i32
    %c0_i32_0 = arith.constant 0 : i32
    %c0_i32_1 = arith.constant 0 : i32
    return %c0_i32, %c0_i32_0 : i32, i32
  }
}

</mosaic_0001>

<llo_original>
// kernel: tpu_custom_call.1
$region0: #{tpu_custom_call.1}
  #allocation0 [shape = 'u32[]', space=smem, size = 0x4, offset = 0x4, fixed_abs, tag = 'smem constant byte address 0x4 - core index']
  #allocation1 [shape = 'u32[144,128]{1,0:T(1,128)}', space=vmem, size = 0x12000, scoped, tag = 'internal scratch']
  %s0 = inlined_call_operand.hbm [shape: bf16[6,8,8], index: 0, kind: input, shape index: {}]
  %s1 = inlined_call_operand.hbm [shape: f32[8,8], index: 1, kind: input, shape index: {}]
  %s2 = inlined_call_operand.vmem [shape: bf16[8,8], index: 2, kind: input, shape index: {}]
  %s3 = inlined_call_operand.vmem [shape: bf16[8,8], index: 3, kind: input, shape index: {}]
  %s4 = inlined_call_operand.vmem [shape: f32[1,8], index: 4, kind: input, shape index: {}]
  %s5 = inlined_call_operand.vmem [shape: bf16[8,32], index: 5, kind: input, shape index: {}]
  %s6 = inlined_call_operand.vmem [shape: f32[1,32], index: 6, kind: input, shape index: {}]
  %s7 = inlined_call_operand.hbm [shape: f32[6,8,32], index: 7, kind: output, shape index: {0}]
  %s8 = inlined_call_operand.hbm [shape: f32[8,8], index: 8, kind: output, shape index: {1}]
  %9 = xla_tuple %s7, %s8
  %s10 = sld [smem:[#allocation0]]
  $region81: #{tpu_custom_call.1} parent=0
    _
  %s12 = ssub.s32 1, %s10
  %s13 = scalar_select 0, %s12, %s10
  $region1: #{tpu_custom_call.1} parent=0
    #allocation2 [shape = 'u8[4096]{0}', space=vmem, size = 0x1000, scoped, tag = 'input window, operand 0']
    #allocation3 [shape = 's32[2]{0}', space=sflag, size = 0x8, scoped, tag = 'scoped memory for tpu_custom_call.1']
    #allocation4 [shape = 's32[2]{0}', space=sflag, size = 0x8, scoped, tag = 'scoped memory for tpu_custom_call.1']
    #allocation5 [shape = 'u8[4096]{0}', space=vmem, size = 0x1000, scoped, tag = 'input window, operand 1, single buffered']
    #allocation6 [shape = 's32[1]{0}', space=sflag, size = 0x4, scoped, tag = 'scoped memory for tpu_custom_call.1']
    #allocation7 [shape = 'u8[8192]{0}', space=vmem, size = 0x2000, scoped, tag = 'output window, operand 0']
    #allocation8 [shape = 'u8[4096]{0}', space=vmem, size = 0x1000, scoped, tag = 'output window, operand 1, single buffered']
    #allocation9 [shape = 's32[1]{0}', space=sflag, size = 0x4, scoped, tag = 'scoped memory for tpu_custom_call.1']
    %14 = vsyncpa [#allocation3], 0
    %s15 = scalar_lea.sflag [#allocation3], 1
    %16 = vsyncpa %s15, 0
    %17 = vsyncpa [#allocation6], 0
    %18 = vsyncpa [#allocation4], 0
    %s19 = scalar_lea.sflag [#allocation4], 1
    %20 = vsyncpa %s19, 0
    %21 = vsyncpa [#allocation9], 0
    loop: start=0, step=1, limit=8
    $region2: #{tpu_custom_call.1} parent=1 // loop_pre_header
      _
    $region3: #{tpu_custom_call.1} parent=1 // loop_header
      %s23 = sphi 0, %s27
      %p24 = scmp.ge.s32.totalorder %s23, 8
      %s33 = sphi 0, %s35
      %s36 = sphi 0, %s33
      %s37 = sphi 0, %s36
      %s53 = sphi 0, %s37
      %s57 = sphi 0, %s57
      %s59 = sphi 0, %s57
      %s60 = sphi 0, %s59
      %s74 = sphi 0, %s60
      %s78 = sphi 0, %s78
      %s80 = sphi 0, %s78
      %s81 = sphi 0, %s80
      %s95 = sphi 0, %s81
      %s99 = sphi 0, %s99
      %s101 = sphi 0, %s99
      %s102 = sphi 0, %s101
      %s116 = sphi 0, %s102
      %s120 = sphi 0, %s120
      %s122 = sphi 0, %s120
      %s123 = sphi 0, %s122
      %s137 = sphi 0, %s123
      %s141 = sphi 0, %s141
      %s143 = sphi 0, %s141
      %s144 = sphi 0, %s143
      %s158 = sphi 0, %s144
      %s162 = sphi 0, %s162
      %s164 = sphi 0, %s162
      %s165 = sphi 0, %s164
      %s179 = sphi 0, %s165
      %s185 = sphi 0, %s187
      %s188 = sphi 0, %s185
      %s189 = sphi 0, %s188
      %s205 = sphi 0, %s189
      %s209 = sphi 0, %s209
      %s211 = sphi 0, %s209
      %s212 = sphi 0, %s211
      %s226 = sphi 0, %s212
    $region4: #{tpu_custom_call.1} parent=1 // loop_header_branch
      %26 = sbr.rel (%p24) target = $region8
    $region5: #{tpu_custom_call.1} parent=1 // loop_body
      %s28 = ssub.s32 %s23, 1
      %s29 = ssub.s32 %s23, 2
      %s30 = sadd.s32 %s23, 1
      %s31 = ssub.s32 %s23, %s30
      %p32 = scmp.eq.s32.totalorder %s31, 0
      %s34 = sadd.s32 %s33, 1
      %s35 = scalar_select %p32, %s33, %s34
      %p38 = pneg %p32
      %p39 = scmp.eq.s32.totalorder %s23, 5
      %p40 = por %p38, %p39
      %p41 = scmp.ne.s32.totalorder %s33, %s36
      %p42 = scmp.eq.s32.totalorder %s23, 0
      %p43 = por %p41, %p42
      %p44 = scmp.ne.s32.totalorder %s33, %s36
      %p45 = scmp.eq.s32.totalorder %s28, 5
      %p46 = por %p44, %p45
      %p47 = scmp.ne.s32.totalorder %s36, %s37
      %p48 = scmp.eq.s32.totalorder %s28, 0
      %p49 = por %p47, %p48
      %p50 = scmp.ne.s32.totalorder %s36, %s37
      %p51 = scmp.eq.s32.totalorder %s29, 5
      %p52 = por %p50, %p51
      %p54 = scmp.ne.s32.totalorder %s37, %s53
      %p55 = scmp.eq.s32.totalorder %s29, 0
      %p56 = por %p54, %p55
      %s58 = sadd.s32 %s57, 1
      %p61 = scmp.eq.s32.totalorder %s23, 5
      %p62 = scmp.ne.s32.totalorder %s57, %s59
      %p63 = scmp.eq.s32.totalorder %s23, 0
      %p64 = por %p62, %p63
      %p65 = scmp.ne.s32.totalorder %s57, %s59
      %p66 = scmp.eq.s32.totalorder %s28, 5
      %p67 = por %p65, %p66
      %p68 = scmp.ne.s32.totalorder %s59, %s60
      %p69 = scmp.eq.s32.totalorder %s28, 0
      %p70 = por %p68, %p69
      %p71 = scmp.ne.s32.totalorder %s59, %s60
      %p72 = scmp.eq.s32.totalorder %s29, 5
      %p73 = por %p71, %p72
      %p75 = scmp.ne.s32.totalorder %s60, %s74
      %p76 = scmp.eq.s32.totalorder %s29, 0
      %p77 = por %p75, %p76
      %s79 = sadd.s32 %s78, 1
      %p82 = scmp.eq.s32.totalorder %s23, 5
      %p83 = scmp.ne.s32.totalorder %s78, %s80
      %p84 = scmp.eq.s32.totalorder %s23, 0
      %p85 = por %p83, %p84
      %p86 = scmp.ne.s32.totalorder %s78, %s80
      %p87 = scmp.eq.s32.totalorder %s28, 5
      %p88 = por %p86, %p87
      %p89 = scmp.ne.s32.totalorder %s80, %s81
      %p90 = scmp.eq.s32.totalorder %s28, 0
      %p91 = por %p89, %p90
      %p92 = scmp.ne.s32.totalorder %s80, %s81
      %p93 = scmp.eq.s32.totalorder %s29, 5
      %p94 = por %p92, %p93
      %p96 = scmp.ne.s32.totalorder %s81, %s95
      %p97 = scmp.eq.s32.totalorder %s29, 0
      %p98 = por %p96, %p97
      %s100 = sadd.s32 %s99, 1
      %p103 = scmp.eq.s32.totalorder %s23, 5
      %p104 = scmp.ne.s32.totalorder %s99, %s101
      %p105 = scmp.eq.s32.totalorder %s23, 0
      %p106 = por %p104, %p105
      %p107 = scmp.ne.s32.totalorder %s99, %s101
      %p108 = scmp.eq.s32.totalorder %s28, 5
      %p109 = por %p107, %p108
      %p110 = scmp.ne.s32.totalorder %s101, %s102
      %p111 = scmp.eq.s32.totalorder %s28, 0
      %p112 = por %p110, %p111
      %p113 = scmp.ne.s32.totalorder %s101, %s102
      %p114 = scmp.eq.s32.totalorder %s29, 5
      %p115 = por %p113, %p114
      %p117 = scmp.ne.s32.totalorder %s102, %s116
      %p118 = scmp.eq.s32.totalorder %s29, 0
      %p119 = por %p117, %p118
      %s121 = sadd.s32 %s120, 1
      %p124 = scmp.eq.s32.totalorder %s23, 5
      %p125 = scmp.ne.s32.totalorder %s120, %s122
      %p126 = scmp.eq.s32.totalorder %s23, 0
      %p127 = por %p125, %p126
      %p128 = scmp.ne.s32.totalorder %s120, %s122
      %p129 = scmp.eq.s32.totalorder %s28, 5
      %p130 = por %p128, %p129
      %p131 = scmp.ne.s32.totalorder %s122, %s123
      %p132 = scmp.eq.s32.totalorder %s28, 0
      %p133 = por %p131, %p132
      %p134 = scmp.ne.s32.totalorder %s122, %s123
      %p135 = scmp.eq.s32.totalorder %s29, 5
      %p136 = por %p134, %p135
      %p138 = scmp.ne.s32.totalorder %s123, %s137
      %p139 = scmp.eq.s32.totalorder %s29, 0
      %p140 = por %p138, %p139
      %s142 = sadd.s32 %s141, 1
      %p145 = scmp.eq.s32.totalorder %s23, 5
      %p146 = scmp.ne.s32.totalorder %s141, %s143
      %p147 = scmp.eq.s32.totalorder %s23, 0
      %p148 = por %p146, %p147
      %p149 = scmp.ne.s32.totalorder %s141, %s143
      %p150 = scmp.eq.s32.totalorder %s28, 5
      %p151 = por %p149, %p150
      %p152 = scmp.ne.s32.totalorder %s143, %s144
      %p153 = scmp.eq.s32.totalorder %s28, 0
      %p154 = por %p152, %p153
      %p155 = scmp.ne.s32.totalorder %s143, %s144
      %p156 = scmp.eq.s32.totalorder %s29, 5
      %p157 = por %p155, %p156
      %p159 = scmp.ne.s32.totalorder %s144, %s158
      %p160 = scmp.eq.s32.totalorder %s29, 0
      %p161 = por %p159, %p160
      %s163 = sadd.s32 %s162, 1
      %p166 = scmp.eq.s32.totalorder %s23, 5
      %p167 = scmp.ne.s32.totalorder %s162, %s164
      %p168 = scmp.eq.s32.totalorder %s23, 0
      %p169 = por %p167, %p168
      %p170 = scmp.ne.s32.totalorder %s162, %s164
      %p171 = scmp.eq.s32.totalorder %s28, 5
      %p172 = por %p170, %p171
      %p173 = scmp.ne.s32.totalorder %s164, %s165
      %p174 = scmp.eq.s32.totalorder %s28, 0
      %p175 = por %p173, %p174
      %p176 = scmp.ne.s32.totalorder %s164, %s165
      %p177 = scmp.eq.s32.totalorder %s29, 5
      %p178 = por %p176, %p177
      %p180 = scmp.ne.s32.totalorder %s165, %s179
      %p181 = scmp.eq.s32.totalorder %s29, 0
      %p182 = por %p180, %p181
      %s183 = ssub.s32 %s23, %s30
      %p184 = scmp.eq.s32.totalorder %s183, 0
      %s186 = sadd.s32 %s185, 1
      %s187 = scalar_select %p184, %s185, %s186
      %p190 = pneg %p184
      %p191 = scmp.eq.s32.totalorder %s23, 5
      %p192 = por %p190, %p191
      %p193 = scmp.ne.s32.totalorder %s185, %s188
      %p194 = scmp.eq.s32.totalorder %s23, 0
      %p195 = por %p193, %p194
      %p196 = scmp.ne.s32.totalorder %s185, %s188
      %p197 = scmp.eq.s32.totalorder %s28, 5
      %p198 = por %p196, %p197
      %p199 = scmp.ne.s32.totalorder %s188, %s189
      %p200 = scmp.eq.s32.totalorder %s28, 0
      %p201 = por %p199, %p200
      %p202 = scmp.ne.s32.totalorder %s188, %s189
      %p203 = scmp.eq.s32.totalorder %s29, 5
      %p204 = por %p202, %p203
      %p206 = scmp.ne.s32.totalorder %s189, %s205
      %p207 = scmp.eq.s32.totalorder %s29, 0
      %p208 = por %p206, %p207
      %s210 = sadd.s32 %s209, 1
      %p213 = scmp.eq.s32.totalorder %s23, 5
      %p214 = scmp.ne.s32.totalorder %s209, %s211
      %p215 = scmp.eq.s32.totalorder %s23, 0
      %p216 = por %p214, %p215
      %p217 = scmp.ne.s32.totalorder %s209, %s211
      %p218 = scmp.eq.s32.totalorder %s28, 5
      %p219 = por %p217, %p218
      %p220 = scmp.ne.s32.totalorder %s211, %s212
      %p221 = scmp.eq.s32.totalorder %s28, 0
      %p222 = por %p220, %p221
      %p223 = scmp.ne.s32.totalorder %s211, %s212
      %p224 = scmp.eq.s32.totalorder %s29, 5
      %p225 = por %p223, %p224
      %p227 = scmp.ne.s32.totalorder %s212, %s226
      %p228 = scmp.eq.s32.totalorder %s29, 0
      %p229 = por %p227, %p228
      %p230 = scmp.le.s32.totalorder 1, %s23
      %p231 = scmp.lt.s32.totalorder %s23, 7
      %p232 = pnand %p230, %p231
      %p233 = pneg %p232
      // Predicated region
      $region9: #{tpu_custom_call.1} parent=5 // pred_check
        _
      $region10: #{tpu_custom_call.1} parent=5 // pred_check_branch
        %235 = sbr.rel (%p232) target = $region12
      $region11: #{tpu_custom_call.1} parent=5 // pred_region
        %s236 = ssub.s32 %s23, 1
        // Predicated region
        $region13: #{tpu_custom_call.1} parent=11 // pred_check
          %p237 = pneg %p70
        $region14: #{tpu_custom_call.1} parent=11 // pred_check_branch
          %239 = sbr.rel (%p237) target = $region16
        $region15: #{tpu_custom_call.1} parent=11 // pred_region
          %s241 = ssub.s32 128, 128
          %242 = vsyncadd [#allocation6], %s241
          %s244 = sshll.u32 [#allocation5], 4
          %s245 = int_to_ptr.vmem [resolvable:$true] %s244
          %247 = dma.hbm_to_vmem [thread:$0]  %s1, 128, %s245, [#allocation6]
        $region16: #{tpu_custom_call.1} parent=11 // pred_fallthru
          _
        // Predicated region
        $region17: #{tpu_custom_call.1} parent=11 // pred_check
          %p248 = pneg %p91
        $region18: #{tpu_custom_call.1} parent=11 // pred_check_branch
          %250 = sbr.rel (%p248) target = $region20
        $region19: #{tpu_custom_call.1} parent=11 // pred_region
          _
        $region20: #{tpu_custom_call.1} parent=11 // pred_fallthru
          _
        // Predicated region
        $region21: #{tpu_custom_call.1} parent=11 // pred_check
          %p251 = pneg %p112
        $region22: #{tpu_custom_call.1} parent=11 // pred_check_branch
          %253 = sbr.rel (%p251) target = $region24
        $region23: #{tpu_custom_call.1} parent=11 // pred_region
          _
        $region24: #{tpu_custom_call.1} parent=11 // pred_fallthru
          _
        // Predicated region
        $region25: #{tpu_custom_call.1} parent=11 // pred_check
          %p254 = pneg %p133
        $region26: #{tpu_custom_call.1} parent=11 // pred_check_branch
          %256 = sbr.rel (%p254) target = $region28
        $region27: #{tpu_custom_call.1} parent=11 // pred_region
          _
        $region28: #{tpu_custom_call.1} parent=11 // pred_fallthru
          _
        // Predicated region
        $region29: #{tpu_custom_call.1} parent=11 // pred_check
          %p257 = pneg %p154
        $region30: #{tpu_custom_call.1} parent=11 // pred_check_branch
          %259 = sbr.rel (%p257) target = $region32
        $region31: #{tpu_custom_call.1} parent=11 // pred_region
          _
        $region32: #{tpu_custom_call.1} parent=11 // pred_fallthru
          _
        // Predicated region
        $region33: #{tpu_custom_call.1} parent=11 // pred_check
          %p260 = pneg %p175
        $region34: #{tpu_custom_call.1} parent=11 // pred_check_branch
          %262 = sbr.rel (%p260) target = $region36
        $region35: #{tpu_custom_call.1} parent=11 // pred_region
          _
        $region36: #{tpu_custom_call.1} parent=11 // pred_fallthru
          _
      $region12: #{tpu_custom_call.1} parent=5 // pred_fallthru
        _
      %p263 = scmp.lt.s32.totalorder %s23, 6
      // Predicated region
      $region37: #{tpu_custom_call.1} parent=5 // pred_check
        %p264 = pneg %p263
      $region38: #{tpu_custom_call.1} parent=5 // pred_check_branch
        %266 = sbr.rel (%p264) target = $region40
      $region39: #{tpu_custom_call.1} parent=5 // pred_region
        // Predicated region
        $region41: #{tpu_custom_call.1} parent=39 // pred_check
          %p267 = pneg %p43
        $region42: #{tpu_custom_call.1} parent=39 // pred_check_branch
          %269 = sbr.rel (%p267) target = $region44
        $region43: #{tpu_custom_call.1} parent=39 // pred_region
          %s270 = sand.u32 %s33, 1
          %s271 = scalar_lea.sflag [#allocation3], %s270
          %s272 = sand.u32 %s33, 1
          %s273 = smul.addr %s272, 4
          %s274 = scalar_lea.vmem [#allocation2], %s273
          %s276 = ssub.s32 64, 64
          %277 = vsyncadd %s271, %s276
          %s278 = smul.addr %s23, 64
          %s279 = scalar_lea.hbm %s0, %s278
          %s281 = sshll.u32 %s274, 4
          %s282 = int_to_ptr.vmem [resolvable:$true] %s281
          %284 = dma.hbm_to_vmem [thread:$0]  %s279, 64, %s282, %s271
        $region44: #{tpu_custom_call.1} parent=39 // pred_fallthru
          _
      $region40: #{tpu_custom_call.1} parent=5 // pred_fallthru
        _
      %p285 = scmp.le.s32.totalorder 1, %s23
      %p286 = scmp.lt.s32.totalorder %s23, 7
      %p287 = pnand %p285, %p286
      %p288 = pneg %p287
      // Predicated region
      $region45: #{tpu_custom_call.1} parent=5 // pred_check
        _
      $region46: #{tpu_custom_call.1} parent=5 // pred_check_branch
        %290 = sbr.rel (%p287) target = $region48
      $region47: #{tpu_custom_call.1} parent=5 // pred_region
        %s291 = ssub.s32 %s23, 1
        %s292 = sand.u32 %s36, 1
        %s293 = scalar_lea.sflag [#allocation3], %s292
        %s294 = sand.u32 %s36, 1
        %s295 = smul.addr %s294, 4
        %s296 = scalar_lea.vmem [#allocation2], %s295
        // Predicated region
        $region49: #{tpu_custom_call.1} parent=47 // pred_check
          %p297 = pneg %p49
        $region50: #{tpu_custom_call.1} parent=47 // pred_check_branch
          %299 = sbr.rel (%p297) target = $region52
        $region51: #{tpu_custom_call.1} parent=47 // pred_region
          %300 = dma.done %s293, 64
        $region52: #{tpu_custom_call.1} parent=47 // pred_fallthru
          _
        // Predicated region
        $region53: #{tpu_custom_call.1} parent=47 // pred_check
          %p301 = pneg %p70
        $region54: #{tpu_custom_call.1} parent=47 // pred_check_branch
          %303 = sbr.rel (%p301) target = $region56
        $region55: #{tpu_custom_call.1} parent=47 // pred_region
          %304 = dma.done [#allocation6], 128
        $region56: #{tpu_custom_call.1} parent=47 // pred_fallthru
          _
        %s305 = sand.u32 %s36, 1
        %s306 = scalar_lea.sflag [#allocation3], %s305
        %s307 = sand.u32 %s36, 1
        %s308 = smul.addr %s307, 4
        %s309 = scalar_lea.vmem [#allocation2], %s308
        %p310 = pneg %p49
        %p311 = pneg %p46
        %p312 = pneg %p70
        %p313 = pneg %p67
        %p314 = pneg %p91
        %p315 = pneg %p88
        %p316 = pneg %p112
        %p317 = pneg %p109
        %p318 = pneg %p133
        %p319 = pneg %p130
        %p320 = pneg %p154
        %p321 = pneg %p151
        %p322 = pneg %p175
        %p323 = pneg %p172
        %p324 = pneg %p201
        %p325 = pneg %p198
        %s326 = sand.u32 %s188, 1
        %s327 = scalar_lea.sflag [#allocation4], %s326
        %s328 = sand.u32 %s188, 1
        %s329 = smul.addr %s328, 8
        %s330 = scalar_lea.vmem [#allocation7], %s329
        %p331 = pneg %p222
        %p332 = pneg %p219
        %p334 = scmp.eq.s32.totalorder %s28, 0
        // Predicated region
        $region57: #{tpu_custom_call.1} parent=47 // pred_check
          %p335 = pneg %p334
        $region58: #{tpu_custom_call.1} parent=47 // pred_check_branch
          %337 = sbr.rel (%p335) target = $region60
        $region59: #{tpu_custom_call.1} parent=47 // pred_region
          %v338 = vld [vmem:[#allocation5] sm:$0xff]
          %vm339 = vcmask 64512
          %340 = vst.msk [vmem:[#allocation8] sm:$0xff] %vm339, %v338
        $region60: #{tpu_custom_call.1} parent=47 // pred_fallthru
          _
        %v341 = vld [vmem:[%s296] sm:$0xf]
        %v342 = vld [vmem:[#allocation8] sm:$0xff]
        %v343 = vld [vmem:[%s2] sm:$0xf]
        %v344 = vpack.c.bf16 %v342, %v342
        %v345 = vld [vmem:[%s3] sm:$0xf]
        %vm346 = vcmask 64512
        %v348 = vsel %vm346, %v344, 0
        %vm350 = vcmask 1043456
        %v352 = vsel %vm350, %v345, 0
        %354 = vmatprep.subr.bf16.mxu0 0
        %355 = vmatpush1.bf16.msra.mxu0 %v352
        %356 = vmatprep.subr.bf16.mxu0 0
        %357 = vmatpush1.bf16.msra.mxu0 0
        %358 = vmatprep.subr.bf16.mxu0 0
        %359 = vmatpush1.bf16.msra.mxu0 0
        %360 = vmatprep.subr.bf16.mxu0 0
        %361 = vmatpush1.bf16.msra.mxu0 0
        %362 = vmatprep.subr.bf16.mxu0 0
        %363 = vmatpush1.bf16.msra.mxu0 0
        %364 = vmatprep.subr.bf16.mxu0 0
        %365 = vmatpush1.bf16.msra.mxu0 0
        %366 = vmatprep.subr.bf16.mxu0 0
        %367 = vmatpush1.bf16.msra.mxu0 0
        %368 = vmatprep.subr.bf16.mxu0 0
        %369 = vmatpush1.bf16.msra.mxu0 0
        %370 = vmatprep.subr.bf16.mxu0 0
        %371 = vmatpush1.bf16.msra.mxu0 0
        %372 = vmatprep.subr.bf16.mxu0 0
        %373 = vmatpush1.bf16.msra.mxu0 0
        %374 = vmatprep.subr.bf16.mxu0 0
        %375 = vmatpush1.bf16.msra.mxu0 0
        %376 = vmatprep.subr.bf16.mxu0 0
        %377 = vmatpush1.bf16.msra.mxu0 0
        %378 = vmatprep.subr.bf16.mxu0 0
        %379 = vmatpush1.bf16.msra.mxu0 0
        %380 = vmatprep.subr.bf16.mxu0 0
        %381 = vmatpush1.bf16.msra.mxu0 0
        %382 = vmatprep.subr.bf16.mxu0 0
        %383 = vmatpush1.bf16.msra.mxu0 0
        %384 = vmatprep.subr.bf16.mxu0 0
        %385 = vmatpush1.bf16.msra.mxu0 0
        %386 = vmatprep.mubr.bf16.mxu0 0
        %387 = vmatmul.mubr.bf16.gmra.mrb[0].mxu0 %v348
        %v388 = vpop.f32.mrb[0].mxu0
        %v389 = vadd.f32 0.0, %v388
        %v390 = vpop.f32.mrb[0].mxu0
        %v391 = vpop.f32.mrb[0].mxu0
        %v392 = vpop.f32.mrb[0].mxu0
        %393 = vdwg.mxu0
        %v395 = vsel %vm346, %v341, 0
        %v398 = vsel %vm350, %v343, 0
        %400 = vmatprep.subr.bf16.mxu0 0
        %401 = vmatpush1.bf16.msra.mxu0 %v398
        %402 = vmatprep.subr.bf16.mxu0 0
        %403 = vmatpush1.bf16.msra.mxu0 0
        %404 = vmatprep.subr.bf16.mxu0 0
        %405 = vmatpush1.bf16.msra.mxu0 0
        %406 = vmatprep.subr.bf16.mxu0 0
        %407 = vmatpush1.bf16.msra.mxu0 0
        %408 = vmatprep.subr.bf16.mxu0 0
        %409 = vmatpush1.bf16.msra.mxu0 0
        %410 = vmatprep.subr.bf16.mxu0 0
        %411 = vmatpush1.bf16.msra.mxu0 0
        %412 = vmatprep.subr.bf16.mxu0 0
        %413 = vmatpush1.bf16.msra.mxu0 0
        %414 = vmatprep.subr.bf16.mxu0 0
        %415 = vmatpush1.bf16.msra.mxu0 0
        %416 = vmatprep.subr.bf16.mxu0 0
        %417 = vmatpush1.bf16.msra.mxu0 0
        %418 = vmatprep.subr.bf16.mxu0 0
        %419 = vmatpush1.bf16.msra.mxu0 0
        %420 = vmatprep.subr.bf16.mxu0 0
        %421 = vmatpush1.bf16.msra.mxu0 0
        %422 = vmatprep.subr.bf16.mxu0 0
        %423 = vmatpush1.bf16.msra.mxu0 0
        %424 = vmatprep.subr.bf16.mxu0 0
        %425 = vmatpush1.bf16.msra.mxu0 0
        %426 = vmatprep.subr.bf16.mxu0 0
        %427 = vmatpush1.bf16.msra.mxu0 0
        %428 = vmatprep.subr.bf16.mxu0 0
        %429 = vmatpush1.bf16.msra.mxu0 0
        %430 = vmatprep.subr.bf16.mxu0 0
        %431 = vmatpush1.bf16.msra.mxu0 0
        %432 = vmatprep.mubr.bf16.mxu0 0
        %433 = vmatmul.mubr.bf16.gmra.mrb[0].mxu0 %v395
        %v434 = vpop.f32.mrb[0].mxu0
        %v435 = vadd.f32 %v389, %v434
        %v436 = vpop.f32.mrb[0].mxu0
        %v437 = vpop.f32.mrb[0].mxu0
        %v438 = vpop.f32.mrb[0].mxu0
        %439 = vdwg.mxu0
        %v440 = vld [vmem:[%s4] sm:$0x1]
        %v442 = vlaneseq
        %v443 = vshrl.u32 %v442, 7
        %v444 = vsub.s32 0, %v443
        %v445 = vrot.slane %v440, %v444
        %v447 = vadd.f32 %v435, %v445
        %v448 = vtanh.pop %v447
        %v449 = vpack.c.bf16 %v448, %v448
        %v450 = vld [vmem:[%s5] sm:$0xf]
        %v451 = vld [vmem:[%s6] sm:$0x1]
        %v453 = vlaneseq
        %v454 = vshrl.u32 %v453, 7
        %v455 = vsub.s32 0, %v454
        %v456 = vrot.slane %v451, %v455
        %v459 = vsel %vm346, %v449, 0
        %v462 = vsel %vm350, %v450, 0
        %464 = vmatprep.subr.bf16.mxu0 0
        %465 = vmatpush1.bf16.msra.mxu0 %v462
        %466 = vmatprep.subr.bf16.mxu0 0
        %467 = vmatpush1.bf16.msra.mxu0 0
        %468 = vmatprep.subr.bf16.mxu0 0
        %469 = vmatpush1.bf16.msra.mxu0 0
        %470 = vmatprep.subr.bf16.mxu0 0
        %471 = vmatpush1.bf16.msra.mxu0 0
        %472 = vmatprep.subr.bf16.mxu0 0
        %473 = vmatpush1.bf16.msra.mxu0 0
        %474 = vmatprep.subr.bf16.mxu0 0
        %475 = vmatpush1.bf16.msra.mxu0 0
        %476 = vmatprep.subr.bf16.mxu0 0
        %477 = vmatpush1.bf16.msra.mxu0 0
        %478 = vmatprep.subr.bf16.mxu0 0
        %479 = vmatpush1.bf16.msra.mxu0 0
        %480 = vmatprep.subr.bf16.mxu0 0
        %481 = vmatpush1.bf16.msra.mxu0 0
        %482 = vmatprep.subr.bf16.mxu0 0
        %483 = vmatpush1.bf16.msra.mxu0 0
        %484 = vmatprep.subr.bf16.mxu0 0
        %485 = vmatpush1.bf16.msra.mxu0 0
        %486 = vmatprep.subr.bf16.mxu0 0
        %487 = vmatpush1.bf16.msra.mxu0 0
        %488 = vmatprep.subr.bf16.mxu0 0
        %489 = vmatpush1.bf16.msra.mxu0 0
        %490 = vmatprep.subr.bf16.mxu0 0
        %491 = vmatpush1.bf16.msra.mxu0 0
        %492 = vmatprep.subr.bf16.mxu0 0
        %493 = vmatpush1.bf16.msra.mxu0 0
        %494 = vmatprep.subr.bf16.mxu0 0
        %495 = vmatpush1.bf16.msra.mxu0 0
        %496 = vmatprep.mubr.bf16.mxu0 0
        %497 = vmatmul.mubr.bf16.gmra.mrb[0].mxu0 %v459
        %v498 = vpop.f32.mrb[0].mxu0
        %v499 = vadd.f32 %v456, %v498
        %v500 = vpop.f32.mrb[0].mxu0
        %v501 = vpop.f32.mrb[0].mxu0
        %v502 = vpop.f32.mrb[0].mxu0
        %503 = vdwg.mxu0
        %504 = vst.msk [vmem:[#allocation8] sm:$0xff] %vm346, %v448
        %vm505 = vcmask 261120
        %506 = vst.msk [vmem:[%s330] sm:$0xff] %vm505, %v499
        %s507 = sand.u32 %s188, 1
        %s508 = scalar_lea.sflag [#allocation4], %s507
        %s509 = sand.u32 %s188, 1
        %s510 = smul.addr %s509, 8
        %s511 = scalar_lea.vmem [#allocation7], %s510
        // Predicated region
        $region61: #{tpu_custom_call.1} parent=47 // pred_check
          %p512 = pneg %p198
        $region62: #{tpu_custom_call.1} parent=47 // pred_check_branch
          %514 = sbr.rel (%p512) target = $region64
        $region63: #{tpu_custom_call.1} parent=47 // pred_region
          %s516 = ssub.s32 128, 128
          %517 = vsyncadd %s508, %s516
          %s518 = smul.addr %s28, 128
          %s519 = scalar_lea.hbm %s7, %s518
          %s521 = sshll.u32 %s511, 4
          %s522 = int_to_ptr.vmem [resolvable:$true] %s521
          %524 = dma.vmem_to_hbm [thread:$0]  %s522, 128, %s519, %s508
        $region64: #{tpu_custom_call.1} parent=47 // pred_fallthru
          _
        // Predicated region
        $region65: #{tpu_custom_call.1} parent=47 // pred_check
          %p525 = pneg %p219
        $region66: #{tpu_custom_call.1} parent=47 // pred_check_branch
          %527 = sbr.rel (%p525) target = $region68
        $region67: #{tpu_custom_call.1} parent=47 // pred_region
          %s529 = ssub.s32 128, 128
          %530 = vsyncadd [#allocation9], %s529
          %s532 = sshll.u32 [#allocation8], 4
          %s533 = int_to_ptr.vmem [resolvable:$true] %s532
          %535 = dma.vmem_to_hbm [thread:$0]  %s533, 128, %s8, [#allocation9]
        $region68: #{tpu_custom_call.1} parent=47 // pred_fallthru
          _
        // Predicated region
        $region69: #{tpu_custom_call.1} parent=47 // pred_check
          %p536 = pneg %p219
        $region70: #{tpu_custom_call.1} parent=47 // pred_check_branch
          %538 = sbr.rel (%p536) target = $region72
        $region71: #{tpu_custom_call.1} parent=47 // pred_region
          %539 = dma.done [#allocation9], 128
        $region72: #{tpu_custom_call.1} parent=47 // pred_fallthru
          _
      $region48: #{tpu_custom_call.1} parent=5 // pred_fallthru
        _
      %p540 = scmp.le.s32.totalorder 2, %s23
      // Predicated region
      $region73: #{tpu_custom_call.1} parent=5 // pred_check
        %p541 = pneg %p540
      $region74: #{tpu_custom_call.1} parent=5 // pred_check_branch
        %543 = sbr.rel (%p541) target = $region76
      $region75: #{tpu_custom_call.1} parent=5 // pred_region
        %s544 = ssub.s32 %s23, 2
        // Predicated region
        $region77: #{tpu_custom_call.1} parent=75 // pred_check
          %p545 = pneg %p204
        $region78: #{tpu_custom_call.1} parent=75 // pred_check_branch
          %547 = sbr.rel (%p545) target = $region80
        $region79: #{tpu_custom_call.1} parent=75 // pred_region
          %s548 = sand.u32 %s189, 1
          %s549 = scalar_lea.sflag [#allocation4], %s548
          %s550 = sand.u32 %s189, 1
          %s551 = smul.addr %s550, 8
          %s552 = scalar_lea.vmem [#allocation7], %s551
          %553 = dma.done %s549, 128
        $region80: #{tpu_custom_call.1} parent=75 // pred_fallthru
          _
      $region76: #{tpu_custom_call.1} parent=5 // pred_fallthru
        _
    $region6: #{tpu_custom_call.1} parent=1 // loop_footer
      %s27 = sadd.s32 1, %s23
    $region7: #{tpu_custom_call.1} parent=1 // loop_footer_branch
      %22 = sbr.rel target = $region3
    $region8: #{tpu_custom_call.1} parent=1 // loop_exit
      _
    %554 = vsyncpa [#allocation3], 1
    %s555 = scalar_lea.sflag [#allocation3], 1
    %556 = vsyncpa %s555, 1
    %557 = vsyncpa [#allocation6], 1
    %558 = vsyncpa [#allocation4], 1
    %s559 = scalar_lea.sflag [#allocation4], 1
    %560 = vsyncpa %s559, 1
    %561 = vsyncpa [#allocation9], 1

</llo_original>
